<compile_context>
chip_gen: v7x
topology: tpu7x:2x2x1
jax: 0.10.0
libtpu: 0.0.40
codegen_flags: <defaults>
</compile_context>

<pallas_src>
import jax
import jax.numpy as jnp
from jax.experimental import pallas as pl
from jax.experimental.pallas import tpu as pltpu

EPS = 1e-5


def _pick_tile(n, cap=256):
    """Largest divisor of n that is <= cap and a multiple of 8 (or n itself)."""
    if n <= cap:
        return n
    for t in range(cap, 7, -1):
        if n % t == 0 and t % 8 == 0:
            return t
    return n  # fallback: full dimension (always legal)


def _layer_norm(h, gamma, beta):
    # Single-pass variance: E[x^2] - mu^2 (two lane reductions over one load).
    mu = jnp.mean(h, axis=-1, keepdims=True)
    ms = jnp.mean(h * h, axis=-1, keepdims=True)
    var = ms - mu * mu
    return (h - mu) * jax.lax.rsqrt(var + EPS) * gamma + beta


# ---------------------------------------------------------------------------
# Kernel 1: fused QKV projection   qkv = x @ [Wq*scale | Wk | Wv]
# ---------------------------------------------------------------------------
def _qkv_proj_kernel(x_ref, wqkv_ref, qkv_ref):
    x = x_ref[...].astype(wqkv_ref.dtype)
    qkv = jnp.dot(x, wqkv_ref[...], preferred_element_type=jnp.float32)
    qkv_ref[...] = qkv.astype(qkv_ref.dtype)


# ---------------------------------------------------------------------------
# Kernel 2: flash attention (online softmax) + residual/LN + FFN + residual/LN
# grid = (B, n_q_tiles, n_kv_tiles); kv is the (innermost) reduction axis.
# ---------------------------------------------------------------------------
def _attn_ffn_kernel(x_ref, q_ref, k_ref, v_ref,
                     w1_ref, b1_ref, w2_ref, b2_ref, gamma_ref, beta_ref,
                     o_ref, m_sc, l_sc, acc_sc):
    qi = pl.program_id(1)
    j = pl.program_id(2)
    tq = q_ref.shape[0]
    tk = k_ref.shape[0]

    # Last KV tile that can contribute to this query tile (block-causal bound).
    j_last = ((qi + 1) * tq - 1) // tk

    @pl.when(j == 0)
    def _init():
        m_sc[...] = jnp.full_like(m_sc, -jnp.inf)
        l_sc[...] = jnp.zeros_like(l_sc)
        acc_sc[...] = jnp.zeros_like(acc_sc)

    @pl.when(j <= j_last)
    def _accumulate():
        q = q_ref[...]                     # (tq, D); 1/sqrt(D) already folded in
        k = k_ref[...]                     # (tk, D)
        s = jnp.dot(q, k.T, preferred_element_type=jnp.float32)   # (tq, tk)

        # Causal mask (a no-op on fully-unmasked off-diagonal tiles).
        row = qi * tq + jax.lax.broadcasted_iota(jnp.int32, (tq, tk), 0)
        col = j * tk + jax.lax.broadcasted_iota(jnp.int32, (tq, tk), 1)
        s = jnp.where(row >= col, s, -jnp.inf)

        m_prev = m_sc[...]
        m_new = jnp.maximum(m_prev, jnp.max(s, axis=-1, keepdims=True))
        alpha = jnp.exp(m_prev - m_new)
        p = jnp.exp(s - m_new)
        l_sc[...] = alpha * l_sc[...] + jnp.sum(p, axis=-1, keepdims=True)
        acc_sc[...] = alpha * acc_sc[...] + jnp.dot(
            p.astype(v_ref.dtype), v_ref[...], preferred_element_type=jnp.float32)
        m_sc[...] = m_new

    @pl.when(j == j_last)
    def _finalize():
        x = x_ref[...]                     # f32 residual input
        gamma = gamma_ref[...]
        beta = beta_ref[...]
        cdt = w1_ref.dtype                 # MXU compute dtype (f32 or bf16)

        attn = acc_sc[...] * pl.reciprocal(l_sc[...], approx=True)
        h = _layer_norm(x + attn, gamma, beta)

        ff = jnp.dot(h.astype(cdt), w1_ref[...],
                     preferred_element_type=jnp.float32) + b1_ref[...]
        ff = jnp.maximum(ff, 0.0)
        ff = jnp.dot(ff.astype(cdt), w2_ref[...],
                     preferred_element_type=jnp.float32) + b2_ref[...]

        o_ref[...] = _layer_norm(h + ff, gamma, beta).astype(o_ref.dtype)


def transformer_layer(x, params, *, compute_dtype=jnp.bfloat16,
                      q_tile=256, kv_tile=256):
    """SASRec TransformerLayer forward.  x: (B, S, D) float32."""
    B, S, D = x.shape
    wq, wk, wv, w1, b1, w2, b2, gamma, beta = params

    cdt = compute_dtype
    scale = 1.0 / jnp.sqrt(jnp.float32(D))
    # Fused QKV weight with the softmax scale baked into the Q columns.
    wqkv = jnp.concatenate([wq * scale, wk, wv], axis=1).astype(cdt)

    # ---- kernel 1: QKV projection over (B*S) rows --------------------------
    n_rows = B * S
    tr = _pick_tile(n_rows, cap=512)
    x2 = x.reshape(n_rows, D)
    qkv = pl.pallas_call(
        _qkv_proj_kernel,
        out_shape=jax.ShapeDtypeStruct((n_rows, 3 * D), cdt),
        grid_spec=pltpu.PrefetchScalarGridSpec(
            num_scalar_prefetch=0,
            grid=(n_rows // tr,),
            in_specs=[
                pl.BlockSpec((tr, D), lambda r: (r, 0)),
                pl.BlockSpec((D, 3 * D), lambda r: (0, 0)),
            ],
            out_specs=pl.BlockSpec((tr, 3 * D), lambda r: (r, 0)),
        ),
        compiler_params=pltpu.CompilerParams(
            dimension_semantics=("parallel",)),
    )(x2, wqkv)

    q = qkv[:, 0 * D:1 * D].reshape(B, S, D)
    k = qkv[:, 1 * D:2 * D].reshape(B, S, D)
    v = qkv[:, 2 * D:3 * D].reshape(B, S, D)

    # ---- kernel 2: flash attention + LN + FFN + LN --------------------------
    tq = _pick_tile(S, cap=q_tile)
    tk = _pick_tile(S, cap=kv_tile)
    n_q, n_kv = S // tq, S // tk

    def q_index(b, qi, j):
        return (b, qi, 0)

    def kv_index(b, qi, j):
        # Clamp fully-masked (block-causal) KV tiles to the diagonal tile so
        # their HBM blocks are never re-fetched; compute there is skipped.
        return (b, jnp.minimum(j, ((qi + 1) * tq - 1) // tk), 0)

    def const2(shape):
        return pl.BlockSpec(shape, lambda b, qi, j: (0, 0))

    w1c = w1.astype(cdt)
    w2c = w2.astype(cdt)

    out = pl.pallas_call(
        _attn_ffn_kernel,
        out_shape=jax.ShapeDtypeStruct((B, S, D), x.dtype),
        grid_spec=pltpu.PrefetchScalarGridSpec(
            num_scalar_prefetch=0,
            grid=(B, n_q, n_kv),
            in_specs=[
                pl.BlockSpec((None, tq, D), q_index),    # x (residual, f32)
                pl.BlockSpec((None, tq, D), q_index),    # q (pre-scaled)
                pl.BlockSpec((None, tk, D), kv_index),   # k
                pl.BlockSpec((None, tk, D), kv_index),   # v
                const2((D, D)),                          # w1
                const2((1, D)),                          # b1
                const2((D, D)),                          # w2
                const2((1, D)),                          # b2
                const2((1, D)),                          # gamma
                const2((1, D)),                          # beta
            ],
            out_specs=pl.BlockSpec((None, tq, D), q_index),
            scratch_shapes=[
                pltpu.VMEM((tq, 1), jnp.float32),        # running max m
                pltpu.VMEM((tq, 1), jnp.float32),        # running denom l
                pltpu.VMEM((tq, D), jnp.float32),        # attention accumulator
            ],
        ),
        compiler_params=pltpu.CompilerParams(
            dimension_semantics=("parallel", "parallel", "arbitrary")),
    )(x, q, k, v, w1c, b1, w2c, b2, gamma, beta)

    return out


def _reference(x, params):
    """Pure-JAX reference for sanity checking."""
    wq, wk, wv, w1, b1, w2, b2, gamma, beta = params
    B, S, D = x.shape
    q = x @ wq
    k = x @ wk
    v = x @ wv
    scores = jnp.einsum("bqd,bkd->bqk", q, k) / jnp.sqrt(jnp.float32(D))
    mask = jnp.tril(jnp.ones((S, S), dtype=bool))[None]
    scores = jnp.where(mask, scores, -jnp.inf)
    w = jax.nn.softmax(scores, axis=-1)
    attn = jnp.einsum("bqk,bkd->bqd", w, v)

    def ln(h):
        mu = jnp.mean(h, axis=-1, keepdims=True)
        var = jnp.mean((h - mu) ** 2, axis=-1, keepdims=True)
        return (h - mu) / jnp.sqrt(var + EPS) * gamma + beta

    h = ln(x + attn)
    ff = jnp.maximum(h @ w1 + b1, 0.0) @ w2 + b2
    return ln(h + ff)


if __name__ == "__main__":
    B, S, D = 2, 8, 32
    key = jax.random.PRNGKey(0)
    keys = jax.random.split(key, 8)

    x = jax.random.normal(keys[0], (B, S, D), dtype=jnp.float32)

    # deterministic parameter init (weights stored as (in, out))
    scale = 1.0 / jnp.sqrt(jnp.float32(D))
    wq = jax.random.normal(keys[1], (D, D), dtype=jnp.float32) * scale
    wk = jax.random.normal(keys[2], (D, D), dtype=jnp.float32) * scale
    wv = jax.random.normal(keys[3], (D, D), dtype=jnp.float32) * scale
    w1 = jax.random.normal(keys[4], (D, D), dtype=jnp.float32) * scale
    b1 = jax.random.normal(keys[5], (1, D), dtype=jnp.float32) * 0.1
    w2 = jax.random.normal(keys[6], (D, D), dtype=jnp.float32) * scale
    b2 = jax.random.normal(keys[7], (1, D), dtype=jnp.float32) * 0.1
    gamma = jnp.ones((1, D), dtype=jnp.float32)
    beta = jnp.zeros((1, D), dtype=jnp.float32)

    params = (wq, wk, wv, w1, b1, w2, b2, gamma, beta)

    ref = _reference(x, params)

    # f32 MXU path: tight check
    out_f32 = transformer_layer(x, params, compute_dtype=jnp.float32)
    out_f32 = jax.block_until_ready(out_f32)
    assert jnp.allclose(out_f32, ref, atol=2e-3, rtol=2e-3), "f32 kernel mismatch vs reference"

    # bf16 MXU inputs / f32 accumulation path (v6e/v7x recommendation): loose check
    out_bf16 = transformer_layer(x, params, compute_dtype=jnp.bfloat16)
    out_bf16 = jax.block_until_ready(out_bf16)
    assert jnp.allclose(out_bf16, ref, atol=1e-1, rtol=1e-1), "bf16 kernel mismatch vs reference"

    print("KERNEL_OK")
</pallas_src>

<mosaic_0001>
module attributes {stable_mosaic.version = 11 : i64} {
  func.func @_qkv_proj_kernel(%arg0: i32, %arg1: memref<16x32xf32, #tpu.memory_space<vmem>>, %arg2: memref<32x96xf32, #tpu.memory_space<vmem>>, %arg3: memref<16x96xf32, #tpu.memory_space<vmem>>) attributes {dimension_semantics = [#tpu.dimension_semantics<parallel>], iteration_bounds = array<i64: 1>, scalar_prefetch = 0 : i64, scratch_operands = 0 : i64, tpu.core_type = #tpu.core_type<tc>, window_params = [{transform_indices = @transform_0, window_bounds = array<i64: 16, 32>}, {pipeline_mode = #tpu.pipeline_mode<synchronous>, transform_indices = @transform_1, window_bounds = array<i64: 32, 96>}, {transform_indices = @transform_2, window_bounds = array<i64: 16, 96>}]} {
    %c0 = arith.constant 0 : index
    %c0_0 = arith.constant 0 : index
    %0 = vector.load %arg1[%c0, %c0_0] : memref<16x32xf32, #tpu.memory_space<vmem>>, vector<16x32xf32>
    %c0_1 = arith.constant 0 : index
    %c0_2 = arith.constant 0 : index
    %1 = vector.load %arg2[%c0_1, %c0_2] : memref<32x96xf32, #tpu.memory_space<vmem>>, vector<32x96xf32>
    %cst = arith.constant dense<0.000000e+00> : vector<16x96xf32>
    %2 = tpu.matmul %0, %1, %cst {dimension_numbers = #tpu.dot_dimension_numbers<[1], [0], [0], [1], [0, 0, 1, 1], [], []>} : vector<16x32xf32>, vector<32x96xf32>, vector<16x96xf32> -> vector<16x96xf32>
    %c0_3 = arith.constant 0 : index
    %c0_4 = arith.constant 0 : index
    %3 = vector.load %arg3[%c0_3, %c0_4] : memref<16x96xf32, #tpu.memory_space<vmem>>, vector<16x96xf32>
    tpu.vector_store %arg3[%c0_3, %c0_4], %2 {strides = array<i32>} : memref<16x96xf32, #tpu.memory_space<vmem>>, vector<16x96xf32>,
    return
  }
  func.func @transform_0(%arg0: i32) -> (i32, i32) {
    %c0_i32 = arith.constant 0 : i32
    %c0_i32_0 = arith.constant 0 : i32
    return %arg0, %c0_i32 : i32, i32
  }
  func.func @transform_1(%arg0: i32) -> (i32, i32) {
    %c0_i32 = arith.constant 0 : i32
    %c0_i32_0 = arith.constant 0 : i32
    %c0_i32_1 = arith.constant 0 : i32
    return %c0_i32, %c0_i32_0 : i32, i32
  }
  func.func @transform_2(%arg0: i32) -> (i32, i32) {
    %c0_i32 = arith.constant 0 : i32
    %c0_i32_0 = arith.constant 0 : i32
    return %arg0, %c0_i32 : i32, i32
  }
}

</mosaic_0001>

<llo_original>
// kernel: tpu_custom_call.1
$region0: #{tpu_custom_call.1}
  #allocation0 [shape = 'u32[]', space=smem, size = 0x4, offset = 0x4, fixed_abs, tag = 'smem constant byte address 0x4 - core index']
  #allocation1 [shape = 'u32[144,128]{1,0:T(1,128)}', space=vmem, size = 0x12000, scoped, tag = 'internal scratch']
  %s0 = inlined_call_operand.hbm [shape: f32[16,32], index: 0, kind: input, shape index: {}]
  %s1 = inlined_call_operand.hbm [shape: f32[32,96], index: 1, kind: input, shape index: {}]
  %s2 = inlined_call_operand.hbm [shape: f32[16,96], index: 2, kind: output, shape index: {}]
  %s3 = sld [smem:[#allocation0]]
  $region26: #{tpu_custom_call.1} parent=0
    _
  %s5 = ssub.s32 1, %s3
  %s6 = scalar_select 0, %s5, %s3
  $region1: #{tpu_custom_call.1} parent=0
    #allocation2 [shape = 'u8[8192]{0}', space=vmem, size = 0x2000, scoped, tag = 'input window, operand 0, single buffered']
    #allocation3 [shape = 's32[1]{0}', space=sflag, size = 0x4, scoped, tag = 'scoped memory for tpu_custom_call.1']
    #allocation4 [shape = 's32[1]{0}', space=sflag, size = 0x4, scoped, tag = 'scoped memory for tpu_custom_call.1']
    #allocation5 [shape = 'u8[16384]{0}', space=vmem, size = 0x4000, scoped, tag = 'input window, operand 1, single buffered']
    #allocation6 [shape = 's32[1]{0}', space=sflag, size = 0x4, scoped, tag = 'scoped memory for tpu_custom_call.1']
    #allocation7 [shape = 'u8[8192]{0}', space=vmem, size = 0x2000, scoped, tag = 'output window, operand 0, single buffered']
    %7 = vsyncpa [#allocation3], 0
    %8 = vsyncpa [#allocation6], 0
    %9 = vsyncpa [#allocation4], 0
    // Predicated region
    $region2: #{tpu_custom_call.1} parent=1 // pred_check
      _
    $region3: #{tpu_custom_call.1} parent=1 // pred_check_branch
      %11 = sbr.rel (0) target = $region5
    $region4: #{tpu_custom_call.1} parent=1 // pred_region
      %s13 = ssub.s32 256, 256
      %14 = vsyncadd [#allocation3], %s13
      %s15 = sshll.u32 [#allocation2], 4
      %s16 = int_to_ptr.vmem [resolvable:$true] %s15
      %21 = dma.hbm_to_vmem [thread:$0]  %s0, 256, %s16, [#allocation3], 128, 128, 8
    $region5: #{tpu_custom_call.1} parent=1 // pred_fallthru
      _
    // Predicated region
    $region6: #{tpu_custom_call.1} parent=1 // pred_check
      _
    $region7: #{tpu_custom_call.1} parent=1 // pred_check_branch
      %23 = sbr.rel (0) target = $region9
    $region8: #{tpu_custom_call.1} parent=1 // pred_region
      %s25 = ssub.s32 512, 512
      %26 = vsyncadd [#allocation6], %s25
      %s27 = sshll.u32 [#allocation5], 4
      %s28 = int_to_ptr.vmem [resolvable:$true] %s27
      %33 = dma.hbm_to_vmem [thread:$0]  %s1, 512, %s28, [#allocation6], 128, 128, 8
    $region9: #{tpu_custom_call.1} parent=1 // pred_fallthru
      _
    // Predicated region
    $region10: #{tpu_custom_call.1} parent=1 // pred_check
      _
    $region11: #{tpu_custom_call.1} parent=1 // pred_check_branch
      %35 = sbr.rel (0) target = $region13
    $region12: #{tpu_custom_call.1} parent=1 // pred_region
      %36 = dma.done [#allocation3], 256
    $region13: #{tpu_custom_call.1} parent=1 // pred_fallthru
      _
    // Predicated region
    $region14: #{tpu_custom_call.1} parent=1 // pred_check
      _
    $region15: #{tpu_custom_call.1} parent=1 // pred_check_branch
      %38 = sbr.rel (0) target = $region17
    $region16: #{tpu_custom_call.1} parent=1 // pred_region
      %39 = dma.done [#allocation6], 512
    $region17: #{tpu_custom_call.1} parent=1 // pred_fallthru
      _
    %v40 = vld [vmem:[#allocation2] sm:$0xff]
    %v41 = vld [vmem:[#allocation2 + $0x8] sm:$0xff]
    %v42 = vld [vmem:[#allocation5] sm:$0xff]
    %v43 = vld [vmem:[#allocation5 + $0x8] sm:$0xff]
    %v44 = vld [vmem:[#allocation5 + $0x10] sm:$0xff]
    %v45 = vld [vmem:[#allocation5 + $0x18] sm:$0xff]
    %vm46 = vcmask 261120
    %v48 = vsel %vm46, %v40, 0
    %v51 = vsel %vm46, %v41, 0
    %53 = vmatprep.subr.mxu0 0.0
    %54 = vmatpush1.msra.mxu0 %v42
    %55 = vmatprep.subr.mxu0 0.0
    %56 = vmatpush1.msra.mxu0 %v43
    %57 = vmatprep.subr.mxu0 0.0
    %58 = vmatpush1.msra.mxu0 %v44
    %59 = vmatprep.subr.mxu0 0.0
    %60 = vmatpush1.msra.mxu0 %v45
    %61 = vmatprep.subr.mxu0 0.0
    %62 = vmatpush1.msra.mxu0 0.0
    %63 = vmatprep.subr.mxu0 0.0
    %64 = vmatpush1.msra.mxu0 0.0
    %65 = vmatprep.subr.mxu0 0.0
    %66 = vmatpush1.msra.mxu0 0.0
    %67 = vmatprep.subr.mxu0 0.0
    %68 = vmatpush1.msra.mxu0 0.0
    %69 = vmatprep.subr.mxu0 0.0
    %70 = vmatpush1.msra.mxu0 0.0
    %71 = vmatprep.subr.mxu0 0.0
    %72 = vmatpush1.msra.mxu0 0.0
    %73 = vmatprep.subr.mxu0 0.0
    %74 = vmatpush1.msra.mxu0 0.0
    %75 = vmatprep.subr.mxu0 0.0
    %76 = vmatpush1.msra.mxu0 0.0
    %77 = vmatprep.subr.mxu0 0.0
    %78 = vmatpush1.msra.mxu0 0.0
    %79 = vmatprep.subr.mxu0 0.0
    %80 = vmatpush1.msra.mxu0 0.0
    %81 = vmatprep.subr.mxu0 0.0
    %82 = vmatpush1.msra.mxu0 0.0
    %83 = vmatprep.subr.mxu0 0.0
    %84 = vmatpush1.msra.mxu0 0.0
    %85 = vmatprep.subr.mxu0 0.0
    %86 = vmatpush1.msra.mxu0 0.0
    %87 = vmatprep.subr.mxu0 0.0
    %88 = vmatpush1.msra.mxu0 0.0
    %89 = vmatprep.subr.mxu0 0.0
    %90 = vmatpush1.msra.mxu0 0.0
    %91 = vmatprep.subr.mxu0 0.0
    %92 = vmatpush1.msra.mxu0 0.0
    %93 = vmatprep.subr.mxu0 0.0
    %94 = vmatpush1.msra.mxu0 0.0
    %95 = vmatprep.subr.mxu0 0.0
    %96 = vmatpush1.msra.mxu0 0.0
    %97 = vmatprep.subr.mxu0 0.0
    %98 = vmatpush1.msra.mxu0 0.0
    %99 = vmatprep.subr.mxu0 0.0
    %100 = vmatpush1.msra.mxu0 0.0
    %101 = vmatprep.subr.mxu0 0.0
    %102 = vmatpush1.msra.mxu0 0.0
    %103 = vmatprep.subr.mxu0 0.0
    %104 = vmatpush1.msra.mxu0 0.0
    %105 = vmatprep.subr.mxu0 0.0
    %106 = vmatpush1.msra.mxu0 0.0
    %107 = vmatprep.subr.mxu0 0.0
    %108 = vmatpush1.msra.mxu0 0.0
    %109 = vmatprep.subr.mxu0 0.0
    %110 = vmatpush1.msra.mxu0 0.0
    %111 = vmatprep.subr.mxu0 0.0
    %112 = vmatpush1.msra.mxu0 0.0
    %113 = vmatprep.subr.mxu0 0.0
    %114 = vmatpush1.msra.mxu0 0.0
    %115 = vmatprep.subr.mxu0 0.0
    %116 = vmatpush1.msra.mxu0 0.0
    %117 = vmatprep.mubr.f32.mxu0 0.0
    %118 = vmatmul.mubr.f32.gmra.mrb[0].mxu0 %v48
    %v119 = vpop.f32.mrb[0].mxu0
    %v120 = vadd.f32 0.0, %v119
    %v121 = vpop.f32.mrb[0].mxu0
    %122 = vmatprep.mubr.f32.mxu0 0.0
    %123 = vmatmul.mubr.f32.gmra.mrb[0].mxu0 %v51
    %v124 = vpop.f32.mrb[0].mxu0
    %v125 = vadd.f32 0.0, %v124
    %v126 = vpop.f32.mrb[0].mxu0
    %127 = vdwg.mxu0
    %vm128 = vcmask 785408
    %129 = vst.msk [vmem:[#allocation7] sm:$0xff] %vm128, %v120
    %130 = vst.msk [vmem:[#allocation7 + $0x8] sm:$0xff] %vm128, %v125
    // Predicated region
    $region18: #{tpu_custom_call.1} parent=1 // pred_check
      _
    $region19: #{tpu_custom_call.1} parent=1 // pred_check_branch
      %132 = sbr.rel (0) target = $region21
    $region20: #{tpu_custom_call.1} parent=1 // pred_region
      %s134 = ssub.s32 256, 256
      %135 = vsyncadd [#allocation4], %s134
      %s136 = sshll.u32 [#allocation7], 4
      %s137 = int_to_ptr.vmem [resolvable:$true] %s136
      %142 = dma.vmem_to_hbm [thread:$0]  %s137, 256, %s2, [#allocation4], 128, 128, 8
    $region21: #{tpu_custom_call.1} parent=1 // pred_fallthru
      _
    // Predicated region
    $region22: #{tpu_custom_call.1} parent=1 // pred_check
      _
    $region23: #{tpu_custom_call.1} parent=1 // pred_check_branch
      %144 = sbr.rel (0) target = $region25
    $region24: #{tpu_custom_call.1} parent=1 // pred_region
      %145 = dma.done [#allocation4], 256
    $region25: #{tpu_custom_call.1} parent=1 // pred_fallthru
      _
    %146 = vsyncpa [#allocation3], 1
    %147 = vsyncpa [#allocation6], 1
    %148 = vsyncpa [#allocation4], 1

</llo_original>
